<compile_context>
chip_gen: v5e
topology: v5e:2x2
jax: 0.10.0
libtpu: 0.0.40
codegen_flags: <defaults>
</compile_context>

<pallas_src>
import jax
import jax.numpy as jnp
from jax import lax
from jax.experimental import pallas as pl
from jax.experimental.pallas import tpu as pltpu


# ---------------------------------------------------------------------------
# Small-graph path: GB graphs per grid step, one batched MXU contraction.
# ---------------------------------------------------------------------------
def _small_graphs_kernel(h_ref, out_ref):
    h = h_ref[...]                                          # [gb, N, D]
    # Batched NT matmul on the MXU (no explicit transpose, no Python unroll).
    qk = jnp.einsum("gnd,gmd->gnm", h, h,
                    preferred_element_type=jnp.float32)     # [gb, N, N] f32
    hf = h.astype(jnp.float32)
    sq_row = jnp.sum(hf * hf, axis=-1, keepdims=True)       # [gb, N, 1]
    sq_col = jnp.sum(hf * hf, axis=-1)[:, None, :]          # [gb, 1, N]
    sm = sq_row + sq_col - 2.0 * qk
    out_ref[...] = jnp.maximum(sm, 0.0).astype(out_ref.dtype)
    # TODO(synk): for N < 128 a lane-dense flattened (gb, N*N) output block
    #             would avoid masked vst.msk stores, but the required
    #             in-kernel minor-dim reshape risks an unsupported Mosaic
    #             relayout, so the robust full-extent (gb, N, N) block is kept
    #             (the HBM writeback of a full per-graph N*N block is
    #             contiguous either way).


# ---------------------------------------------------------------------------
# Large-graph path: one output tile per grid step; the distance epilogue is
# already folded into the augmented contraction, so the kernel is minimal.
# ---------------------------------------------------------------------------
def _tiled_kernel(a_ref, b_ref, out_ref):
    # a_ref: [1, tr, D+4] augmented rows; b_ref: [1, tc, D+4] augmented cols.
    sm = lax.dot_general(a_ref[0], b_ref[0],
                         dimension_numbers=(((1,), (1,)), ((), ())),
                         preferred_element_type=jnp.float32)  # [tr, tc] f32
    out_ref[0] = jnp.maximum(sm, 0.0).astype(out_ref.dtype)


# ---------------------------------------------------------------------------
# Tiling heuristics.
# ---------------------------------------------------------------------------
def _pick_gb(g, n, d, budget_bytes=6 << 20, max_gb=64):
    """Graphs per grid step for the small-N path (divides G, keeps >=2 steps)."""
    # f32 bytes per graph for the per-step working set: double-buffered in/out
    # blocks plus the in-kernel qk/sm intermediates.
    per_graph = 4 * (3 * n * n + 2 * n * d)
    gb = max(1, min(g, max_gb, budget_bytes // max(per_graph, 1)))
    if g >= 2:
        gb = max(1, min(gb, g // 2))   # v7x megacore: keep >= 2 grid steps
    while g % gb:
        gb -= 1
    return gb


def _pick_tiles(n_pad, g, da, budget_bytes=10 << 20):
    """Row/col output tiles for the large-N path.

    Col tile (output lane dim) must be a multiple of 128 or the full extent;
    row tile (sublane dim) a multiple of 8 or the full extent.  The
    double-buffered f32 working set (out block + both augmented input blocks)
    is kept inside budget_bytes, which fits every generation's default
    scoped-VMEM limit (v5e/v6e 16/32 MiB of 128 MiB physical; v7x 32 MiB
    scoped of 64 MiB physical per TC).
    """
    if n_pad <= 1024:
        tc = n_pad                      # full (possibly ragged) extent is legal
    else:                               # n_pad is a multiple of 128 here
        tc = max(t for t in range(128, 1025, 128) if n_pad % t == 0)
    # 2*(tr*tc + tr*da + tc*da)*4 bytes <= budget  ->  tr cap:
    tr_cap = (budget_bytes - 8 * tc * da) // (8 * (tc + da))
    # TODO(synk): very large D (augmented col block alone over budget) would
    #             need K-tiling with an accumulator; node-feature dims are
    #             assumed modest.
    tr_cap = min(n_pad, 1024, max(8, (tr_cap // 8) * 8))
    tr_cands = [t for t in range(8, tr_cap + 1, 8) if n_pad % t == 0]
    tr = max(tr_cands) if tr_cands else n_pad
    if g * (n_pad // tr) < 2:           # v7x megacore: prefer >= 2 blocks
        halves = [t for t in tr_cands if n_pad // t >= 2 and t >= 128]
        if halves:
            tr = max(halves)
    return tr, tc


# ---------------------------------------------------------------------------
# Public wrapper.
# ---------------------------------------------------------------------------
def instance_decoder(batched_h):
    """Pallas port of InstanceDecoder.forward (Wq=Wk=Identity, return_feat=False).

    batched_h: [G, N, D] node features (equal node count per graph).
    Returns (inst_out, feat_out):
      inst_out: [G, N, N] pairwise squared-distance matrices (stacked).
      feat_out: []        (return_feat=False -> projector is None).
    """
    G, N, D = batched_h.shape

    if N <= 256:
        # --- small-graph path --------------------------------------------
        in_bytes = jnp.dtype(batched_h.dtype).itemsize
        gb = _pick_gb(G, N, D)
        cost = pl.CostEstimate(
            flops=2 * G * N * N * D, transcendentals=0,
            bytes_accessed=G * (N * D * in_bytes + N * N * 4))
        sm_all = pl.pallas_call(
            _small_graphs_kernel,
            out_shape=jax.ShapeDtypeStruct((G, N, N), jnp.float32),
            grid_spec=pltpu.PrefetchScalarGridSpec(
                num_scalar_prefetch=0,
                grid=(G // gb,),
                in_specs=[pl.BlockSpec((gb, N, D), lambda b: (b, 0, 0))],
                out_specs=pl.BlockSpec((gb, N, N), lambda b: (b, 0, 0)),
            ),
            compiler_params=pltpu.CompilerParams(
                dimension_semantics=("parallel",)),
            cost_estimate=cost,
        )(batched_h)
        return sm_all, []

    # --- large-graph path: augmented-MXU tiles ----------------------------
    hf = batched_h.astype(jnp.float32)
    n_pad = N if N <= 1024 else pl.cdiv(N, 128) * 128    # ragged big N: pad rows
    if n_pad != N:
        hf = jnp.pad(hf, ((0, 0), (0, n_pad - N), (0, 0)))
    sq = jnp.sum(hf * hf, axis=-1, keepdims=True)        # [G, Np, 1] f32
    # Split the squared norms hi/lo so the folded adds stay f32-accurate even
    # under reduced-precision MXU passes (the -2 scale is exact in any float).
    sq_hi = sq.astype(jnp.bfloat16).astype(jnp.float32)
    sq_lo = sq - sq_hi
    ones = jnp.ones_like(sq)
    a_aug = jnp.concatenate([-2.0 * hf, sq_hi, sq_lo, ones, ones], axis=-1)
    b_aug = jnp.concatenate([hf, ones, ones, sq_hi, sq_lo], axis=-1)
    da = D + 4

    tr, tc = _pick_tiles(n_pad, G, da)
    cost = pl.CostEstimate(
        flops=2 * G * n_pad * n_pad * da, transcendentals=0,
        bytes_accessed=G * (2 * n_pad * da * 4 + n_pad * n_pad * 4))
    sm_all = pl.pallas_call(
        _tiled_kernel,
        out_shape=jax.ShapeDtypeStruct((G, n_pad, n_pad), jnp.float32),
        grid_spec=pltpu.PrefetchScalarGridSpec(
            num_scalar_prefetch=0,
            grid=(G, n_pad // tr, n_pad // tc),
            in_specs=[
                pl.BlockSpec((1, tr, da), lambda g, i, j: (g, i, 0)),  # rows
                pl.BlockSpec((1, tc, da), lambda g, i, j: (g, j, 0)),  # cols
            ],
            out_specs=pl.BlockSpec((1, tr, tc), lambda g, i, j: (g, i, j)),
        ),
        compiler_params=pltpu.CompilerParams(
            dimension_semantics=("parallel", "parallel", "parallel")),
        cost_estimate=cost,
    )(a_aug, b_aug)
    if n_pad != N:
        sm_all = sm_all[:, :N, :N]
    return sm_all, []


# ---------------------------------------------------------------------------
# Reference + tests.
# ---------------------------------------------------------------------------
def _reference(batched_h):
    hf = batched_h.astype(jnp.float32)
    diff = hf[:, :, None, :] - hf[:, None, :, :]          # [G, N, N, D]
    return jnp.sum(diff * diff, axis=-1)


def _check(h, name):
    inst, feat = instance_decoder(h)
    inst = jax.block_until_ready(inst)
    ref = _reference(h)
    assert inst.shape == ref.shape, (name, inst.shape, ref.shape)
    assert feat == []
    assert jnp.allclose(inst, ref, atol=1e-2, rtol=1e-3), f"{name} mismatch"


if __name__ == "__main__":
    key = jax.random.PRNGKey(0)
    k1, k2, k3 = jax.random.split(key, 3)

    def make(k, shape):
        # bf16-exact values keep the check independent of the MXU's f32
        # multi-pass strategy (bf16 x bf16 products are exact in f32).
        x = jax.random.normal(k, shape, dtype=jnp.float32)
        return x.astype(jnp.bfloat16).astype(jnp.float32)

    # 1) Tiny DGL-like batch: small-N path, 1 graph/step (>= 2 grid steps so
    #    both v7x TensorCores get work).
    _check(make(k1, (2, 16, 32)), "small")

    # 2) Larger batch: small-N path with gb=8 graphs per step (single batched
    #    einsum, no static Python unroll).
    _check(make(k2, (16, 16, 32)), "batched")

    # 3) Large graph: tiled augmented-MXU path (tr=320, tc=640, grid (1,2,1)).
    _check(make(k3, (1, 640, 32)), "tiled")

    print("KERNEL_OK")
</pallas_src>

<mosaic_0001>
module attributes {stable_mosaic.version = 11 : i64} {
  func.func @_small_graphs_kernel(%arg0: i32, %arg1: memref<1x16x32xf32, #tpu.memory_space<vmem>>, %arg2: memref<1x16x16xf32, #tpu.memory_space<vmem>>) attributes {dimension_semantics = [#tpu.dimension_semantics<parallel>], iteration_bounds = array<i64: 2>, scalar_prefetch = 0 : i64, scratch_operands = 0 : i64, tpu.core_type = #tpu.core_type<tc>, window_params = [{transform_indices = @transform_0, window_bounds = array<i64: 1, 16, 32>}, {transform_indices = @transform_1, window_bounds = array<i64: 1, 16, 16>}]} {
    %c0 = arith.constant 0 : index
    %c0_0 = arith.constant 0 : index
    %c0_1 = arith.constant 0 : index
    %0 = vector.load %arg1[%c0, %c0_0, %c0_1] : memref<1x16x32xf32, #tpu.memory_space<vmem>>, vector<1x16x32xf32>
    "tpu.trace_start"() <{level = 10 : i32, message = "gnd,gmd->gnm"}> : () -> ()
    %cst = arith.constant dense<0.000000e+00> : vector<1x16x16xf32>
    %1 = tpu.matmul %0, %0, %cst {dimension_numbers = #tpu.dot_dimension_numbers<[2], [2], [1], [1], [0, 0, 0, 1, 1, 1], [0], [0]>} : vector<1x16x32xf32>, vector<1x16x32xf32>, vector<1x16x16xf32> -> vector<1x16x16xf32>
    "tpu.trace_stop"() : () -> ()
    %2 = arith.mulf %0, %0 : vector<1x16x32xf32>
    %cst_2 = arith.constant dense<0.000000e+00> : vector<1x16xf32>
    %3 = vector.multi_reduction <add>, %2, %cst_2 [2] : vector<1x16x32xf32> to vector<1x16xf32>
    %4 = vector.shape_cast %3 : vector<1x16xf32> to vector<1x16x1xf32>
    %5 = arith.mulf %0, %0 : vector<1x16x32xf32>
    %cst_3 = arith.constant dense<0.000000e+00> : vector<1x16xf32>
    %6 = vector.multi_reduction <add>, %5, %cst_3 [2] : vector<1x16x32xf32> to vector<1x16xf32>
    %7 = vector.shape_cast %6 : vector<1x16xf32> to vector<1x1x16xf32>
    %8 = vector.broadcast %4 : vector<1x16x1xf32> to vector<1x16x16xf32>
    %9 = vector.broadcast %7 : vector<1x1x16xf32> to vector<1x16x16xf32>
    %10 = arith.addf %8, %9 : vector<1x16x16xf32>
    %cst_4 = arith.constant 2.000000e+00 : f32
    %11 = vector.broadcast %cst_4 : f32 to vector<1x16x16xf32>
    %12 = arith.mulf %11, %1 : vector<1x16x16xf32>
    %13 = arith.subf %10, %12 : vector<1x16x16xf32>
    %cst_5 = arith.constant 0.000000e+00 : f32
    %14 = vector.broadcast %cst_5 : f32 to vector<1x16x16xf32>
    %15 = arith.maximumf %13, %14 : vector<1x16x16xf32>
    %c0_6 = arith.constant 0 : index
    %c0_7 = arith.constant 0 : index
    %c0_8 = arith.constant 0 : index
    %16 = vector.load %arg2[%c0_6, %c0_7, %c0_8] : memref<1x16x16xf32, #tpu.memory_space<vmem>>, vector<1x16x16xf32>
    tpu.vector_store %arg2[%c0_6, %c0_7, %c0_8], %15 {strides = array<i32>} : memref<1x16x16xf32, #tpu.memory_space<vmem>>, vector<1x16x16xf32>,
    return
  }
  func.func @transform_0(%arg0: i32) -> (i32, i32, i32) {
    %c0_i32 = arith.constant 0 : i32
    %c0_i32_0 = arith.constant 0 : i32
    %c0_i32_1 = arith.constant 0 : i32
    return %arg0, %c0_i32, %c0_i32_0 : i32, i32, i32
  }
  func.func @transform_1(%arg0: i32) -> (i32, i32, i32) {
    %c0_i32 = arith.constant 0 : i32
    %c0_i32_0 = arith.constant 0 : i32
    %c0_i32_1 = arith.constant 0 : i32
    return %arg0, %c0_i32, %c0_i32_0 : i32, i32, i32
  }
}

</mosaic_0001>

<llo_original>
// kernel: tpu_custom_call.1
$region0: #{tpu_custom_call.1}
  #allocation0 [shape = 'u32[]', space=smem, size = 0x4, offset = 0x4, fixed_abs, tag = 'smem constant byte address 0x4 - core index']
  #allocation1 [shape = 'u32[72,128]{1,0:T(1,128)}', space=vmem, size = 0x9000, scoped, tag = 'internal scratch']
  %s0 = inlined_call_operand.hbm [shape: f32[2,16,32], index: 0, kind: input, shape index: {}]
  %s1 = inlined_call_operand.hbm [shape: f32[2,16,16], index: 1, kind: output, shape index: {}]
  %s2 = sld [smem:[#allocation0]]
  $region41: #{tpu_custom_call.1} parent=0
    _
  %s4 = ssub.s32 1, %s2
  %s5 = scalar_select 0, %s4, %s2
  $region1: #{tpu_custom_call.1} parent=0
    #allocation2 [shape = 'u8[16384]{0}', space=vmem, size = 0x4000, scoped, tag = 'input window, operand 0']
    #allocation3 [shape = 's32[2]{0}', space=sflag, size = 0x8, scoped, tag = 'scoped memory for tpu_custom_call.1']
    #allocation4 [shape = 's32[2]{0}', space=sflag, size = 0x8, scoped, tag = 'scoped memory for tpu_custom_call.1']
    #allocation5 [shape = 'u8[16384]{0}', space=vmem, size = 0x4000, scoped, tag = 'output window, operand 0']
    %6 = vsyncpa [#allocation3], 0
    %s7 = scalar_lea.sflag [#allocation3], 1
    %8 = vsyncpa %s7, 0
    %9 = vsyncpa [#allocation4], 0
    %s10 = scalar_lea.sflag [#allocation4], 1
    %11 = vsyncpa %s10, 0
    loop: start=0, step=1, limit=4
    $region2: #{tpu_custom_call.1} parent=1 // loop_pre_header
      _
    $region3: #{tpu_custom_call.1} parent=1 // loop_header
      %s13 = sphi 0, %s17
      %p14 = scmp.ge.s32.totalorder %s13, 4
      %s23 = sphi 0, %s25
      %s26 = sphi 0, %s23
      %s27 = sphi 0, %s26
      %s43 = sphi 0, %s27
      %s49 = sphi 0, %s51
      %s52 = sphi 0, %s49
      %s53 = sphi 0, %s52
      %s69 = sphi 0, %s53
    $region4: #{tpu_custom_call.1} parent=1 // loop_header_branch
      %16 = sbr.rel (%p14) target = $region8
    $region5: #{tpu_custom_call.1} parent=1 // loop_body
      %s18 = ssub.s32 %s13, 1
      %s19 = ssub.s32 %s13, 2
      %s20 = sadd.s32 %s13, 1
      %s21 = ssub.s32 %s13, %s20
      %p22 = scmp.eq.s32.totalorder %s21, 0
      %s24 = sadd.s32 %s23, 1
      %s25 = scalar_select %p22, %s23, %s24
      %p28 = pneg %p22
      %p29 = scmp.eq.s32.totalorder %s13, 1
      %p30 = por %p28, %p29
      %p31 = scmp.ne.s32.totalorder %s23, %s26
      %p32 = scmp.eq.s32.totalorder %s13, 0
      %p33 = por %p31, %p32
      %p34 = scmp.ne.s32.totalorder %s23, %s26
      %p35 = scmp.eq.s32.totalorder %s18, 1
      %p36 = por %p34, %p35
      %p37 = scmp.ne.s32.totalorder %s26, %s27
      %p38 = scmp.eq.s32.totalorder %s18, 0
      %p39 = por %p37, %p38
      %p40 = scmp.ne.s32.totalorder %s26, %s27
      %p41 = scmp.eq.s32.totalorder %s19, 1
      %p42 = por %p40, %p41
      %p44 = scmp.ne.s32.totalorder %s27, %s43
      %p45 = scmp.eq.s32.totalorder %s19, 0
      %p46 = por %p44, %p45
      %s47 = ssub.s32 %s13, %s20
      %p48 = scmp.eq.s32.totalorder %s47, 0
      %s50 = sadd.s32 %s49, 1
      %s51 = scalar_select %p48, %s49, %s50
      %p54 = pneg %p48
      %p55 = scmp.eq.s32.totalorder %s13, 1
      %p56 = por %p54, %p55
      %p57 = scmp.ne.s32.totalorder %s49, %s52
      %p58 = scmp.eq.s32.totalorder %s13, 0
      %p59 = por %p57, %p58
      %p60 = scmp.ne.s32.totalorder %s49, %s52
      %p61 = scmp.eq.s32.totalorder %s18, 1
      %p62 = por %p60, %p61
      %p63 = scmp.ne.s32.totalorder %s52, %s53
      %p64 = scmp.eq.s32.totalorder %s18, 0
      %p65 = por %p63, %p64
      %p66 = scmp.ne.s32.totalorder %s52, %s53
      %p67 = scmp.eq.s32.totalorder %s19, 1
      %p68 = por %p66, %p67
      %p70 = scmp.ne.s32.totalorder %s53, %s69
      %p71 = scmp.eq.s32.totalorder %s19, 0
      %p72 = por %p70, %p71
      %p73 = scmp.le.s32.totalorder 1, %s13
      %p74 = scmp.lt.s32.totalorder %s13, 3
      %p75 = pnand %p73, %p74
      %p76 = pneg %p75
      // Predicated region
      $region9: #{tpu_custom_call.1} parent=5 // pred_check
        _
      $region10: #{tpu_custom_call.1} parent=5 // pred_check_branch
        %78 = sbr.rel (%p75) target = $region12
      $region11: #{tpu_custom_call.1} parent=5 // pred_region
        %s79 = ssub.s32 %s13, 1
      $region12: #{tpu_custom_call.1} parent=5 // pred_fallthru
        _
      %p80 = scmp.lt.s32.totalorder %s13, 2
      // Predicated region
      $region13: #{tpu_custom_call.1} parent=5 // pred_check
        %p81 = pneg %p80
      $region14: #{tpu_custom_call.1} parent=5 // pred_check_branch
        %83 = sbr.rel (%p81) target = $region16
      $region15: #{tpu_custom_call.1} parent=5 // pred_region
        // Predicated region
        $region17: #{tpu_custom_call.1} parent=15 // pred_check
          %p84 = pneg %p33
        $region18: #{tpu_custom_call.1} parent=15 // pred_check_branch
          %86 = sbr.rel (%p84) target = $region20
        $region19: #{tpu_custom_call.1} parent=15 // pred_region
          %s87 = sand.u32 %s23, 1
          %s88 = scalar_lea.sflag [#allocation3], %s87
          %s89 = sand.u32 %s23, 1
          %s90 = smul.addr %s89, 16
          %s91 = scalar_lea.vmem [#allocation2], %s90
          %93 = vsyncadd %s88, 0
          %s94 = smul.addr %s13, 2
          %s95 = smul.addr %s94, 8
          %s96 = scalar_lea.hbm %s0, %s95
          %s97 = sshll.u32 %s96, 4
          %s98 = int_to_ptr.hbm [resolvable:$true] %s97
          %s99 = sshll.u32 %s91, 4
          %s100 = int_to_ptr.vmem [resolvable:$true] %s99
          %105 = dma.hbm_to_vmem [thread:$0]  %s98, 256, %s100, %s88, 128, 128, 8
        $region20: #{tpu_custom_call.1} parent=15 // pred_fallthru
          _
      $region16: #{tpu_custom_call.1} parent=5 // pred_fallthru
        _
      %p106 = scmp.le.s32.totalorder 1, %s13
      %p107 = scmp.lt.s32.totalorder %s13, 3
      %p108 = pnand %p106, %p107
      %p109 = pneg %p108
      // Predicated region
      $region21: #{tpu_custom_call.1} parent=5 // pred_check
        _
      $region22: #{tpu_custom_call.1} parent=5 // pred_check_branch
        %111 = sbr.rel (%p108) target = $region24
      $region23: #{tpu_custom_call.1} parent=5 // pred_region
        %s112 = ssub.s32 %s13, 1
        %s113 = sand.u32 %s26, 1
        %s114 = scalar_lea.sflag [#allocation3], %s113
        %s115 = sand.u32 %s26, 1
        %s116 = smul.addr %s115, 16
        %s117 = scalar_lea.vmem [#allocation2], %s116
        // Predicated region
        $region25: #{tpu_custom_call.1} parent=23 // pred_check
          %p118 = pneg %p39
        $region26: #{tpu_custom_call.1} parent=23 // pred_check_branch
          %120 = sbr.rel (%p118) target = $region28
        $region27: #{tpu_custom_call.1} parent=23 // pred_region
          %122 = dma.done %s114, 256
        $region28: #{tpu_custom_call.1} parent=23 // pred_fallthru
          _
        %s123 = sand.u32 %s26, 1
        %s124 = scalar_lea.sflag [#allocation3], %s123
        %s125 = sand.u32 %s26, 1
        %s126 = smul.addr %s125, 16
        %s127 = scalar_lea.vmem [#allocation2], %s126
        %p128 = pneg %p39
        %p129 = pneg %p36
        %p130 = pneg %p65
        %p131 = pneg %p62
        %s132 = sand.u32 %s52, 1
        %s133 = scalar_lea.sflag [#allocation4], %s132
        %s134 = sand.u32 %s52, 1
        %s135 = smul.addr %s134, 16
        %s136 = scalar_lea.vmem [#allocation5], %s135
        %v137 = vld [vmem:[%s117] sm:$0xff]
        %v138 = vld [vmem:[%s117 + $0x8] sm:$0xff]
        %vm139 = vcmask 261120
        %v141 = vsel %vm139, %v137, 0
        %v144 = vsel %vm139, %v138, 0
        %146 = vmatpush.xpose.msra.mxu0 0.0
        %147 = vmatpush.xpose.msra.mxu0 0.0
        %148 = vmatpush.xpose.msra.mxu0 0.0
        %149 = vmatpush.xpose.msra.mxu0 0.0
        %150 = vmatpush.xpose.msra.mxu0 0.0
        %151 = vmatpush.xpose.msra.mxu0 0.0
        %152 = vmatpush.xpose.msra.mxu0 0.0
        %153 = vmatpush.xpose.msra.mxu0 0.0
        %154 = vmatpush.xpose.msra.mxu0 0.0
        %155 = vmatpush.xpose.msra.mxu0 0.0
        %156 = vmatpush.xpose.msra.mxu0 0.0
        %157 = vmatpush.xpose.msra.mxu0 0.0
        %158 = vmatpush.xpose.msra.mxu0 0.0
        %159 = vmatpush.xpose.msra.mxu0 0.0
        %160 = vmatpush.xpose.msra.mxu0 %v144
        %161 = vmatpush.xpose.msra.mxu0 %v141
        %162 = vmatmul.f32.gmra.mxu0 %v141
        %v163 = vpop.f32.mrf.mxu0
        %v164 = vadd.f32 0.0, %v163
        %165 = vmatmul.f32.gmra.mxu0 %v144
        %v166 = vpop.f32.mrf.mxu0
        %v167 = vadd.f32 0.0, %v166
        %168 = vdwg.mxu0
        %v169 = vmul.f32 %v137, %v137
        %v170 = vmul.f32 %v138, %v138
        %v171 = vsel %vm139, %v169, 0.0
        %172 = vadd.xlane.f32.xlu0 %v171
        %v173 = vpop.xlane.xlu0 %172
        %v174 = vsel %vm139, %v170, 0.0
        %175 = vadd.xlane.f32.xlu0 %v174
        %v176 = vpop.xlane.xlu0 %175
        %v179 = vlaneseq
        %v180 = vand.u32 %v179, 127
        %v181 = vperm.slane %v173, %v180
        %v182 = vadd.s32 %v180, 4294967288
        %v183 = vperm.slane %v176, %v182
        %vm184 = vcmask 130112
        %v185 = vsel %vm184, %v183, %v181
        %vm186 = vcmask 1042434
        %v187 = vsel %vm186, %v185, %v185
        %vm188 = vcmask 1043459
        %v189 = vsel %vm188, %v185, %v187
        %vm190 = vcmask 1044484
        %v191 = vsel %vm190, %v185, %v189
        %vm192 = vcmask 1045509
        %v193 = vsel %vm192, %v185, %v191
        %vm194 = vcmask 1046534
        %v195 = vsel %vm194, %v185, %v193
        %vm196 = vcmask 1047559
        %v197 = vsel %vm196, %v185, %v195
        %v199 = vadd.f32 %v173, %v197
        %v200 = vadd.f32 %v176, %v197
        %v201 = vmul.f32 %v164, 2.0
        %v202 = vmul.f32 %v167, 2.0
        %v203 = vsub.f32 %v199, %v201
        %v204 = vsub.f32 %v200, %v202
        %v205 = vmax.f32 %v203, 0.0
        %v206 = vmax.f32 %v204, 0.0
        %vm207 = vcmask 130048
        %208 = vst.msk [vmem:[%s136] sm:$0xff] %vm207, %v205
        %209 = vst.msk [vmem:[%s136 + $0x8] sm:$0xff] %vm207, %v206
        %s210 = sand.u32 %s52, 1
        %s211 = scalar_lea.sflag [#allocation4], %s210
        %s212 = sand.u32 %s52, 1
        %s213 = smul.addr %s212, 16
        %s214 = scalar_lea.vmem [#allocation5], %s213
        // Predicated region
        $region29: #{tpu_custom_call.1} parent=23 // pred_check
          %p215 = pneg %p62
        $region30: #{tpu_custom_call.1} parent=23 // pred_check_branch
          %217 = sbr.rel (%p215) target = $region32
        $region31: #{tpu_custom_call.1} parent=23 // pred_region
          %219 = vsyncadd %s211, 0
          %s220 = smul.addr %s18, 2
          %s221 = smul.addr %s220, 8
          %s222 = scalar_lea.hbm %s1, %s221
          %s223 = sshll.u32 %s214, 4
          %s224 = int_to_ptr.vmem [resolvable:$true] %s223
          %s225 = sshll.u32 %s222, 4
          %s226 = int_to_ptr.hbm [resolvable:$true] %s225
          %231 = dma.vmem_to_hbm [thread:$0]  %s224, 256, %s226, %s211, 128, 128, 8
        $region32: #{tpu_custom_call.1} parent=23 // pred_fallthru
          _
      $region24: #{tpu_custom_call.1} parent=5 // pred_fallthru
        _
      %p232 = scmp.le.s32.totalorder 2, %s13
      // Predicated region
      $region33: #{tpu_custom_call.1} parent=5 // pred_check
        %p233 = pneg %p232
      $region34: #{tpu_custom_call.1} parent=5 // pred_check_branch
        %235 = sbr.rel (%p233) target = $region36
      $region35: #{tpu_custom_call.1} parent=5 // pred_region
        %s236 = ssub.s32 %s13, 2
        // Predicated region
        $region37: #{tpu_custom_call.1} parent=35 // pred_check
          %p237 = pneg %p68
        $region38: #{tpu_custom_call.1} parent=35 // pred_check_branch
          %239 = sbr.rel (%p237) target = $region40
        $region39: #{tpu_custom_call.1} parent=35 // pred_region
          %s240 = sand.u32 %s53, 1
          %s241 = scalar_lea.sflag [#allocation4], %s240
          %s242 = sand.u32 %s53, 1
          %s243 = smul.addr %s242, 16
          %s244 = scalar_lea.vmem [#allocation5], %s243
          %246 = dma.done %s241, 256
        $region40: #{tpu_custom_call.1} parent=35 // pred_fallthru
          _
      $region36: #{tpu_custom_call.1} parent=5 // pred_fallthru
        _
    $region6: #{tpu_custom_call.1} parent=1 // loop_footer
      %s17 = sadd.s32 1, %s13
    $region7: #{tpu_custom_call.1} parent=1 // loop_footer_branch
      %12 = sbr.rel target = $region3
    $region8: #{tpu_custom_call.1} parent=1 // loop_exit
      _
    %247 = vsyncpa [#allocation3], 1
    %s248 = scalar_lea.sflag [#allocation3], 1
    %249 = vsyncpa %s248, 1
    %250 = vsyncpa [#allocation4], 1
    %s251 = scalar_lea.sflag [#allocation4], 1
    %252 = vsyncpa %s251, 1

</llo_original>
